<compile_context>
chip_gen: v5e
topology: v5e:2x2
jax: 0.10.0
libtpu: 0.0.40
codegen_flags: <defaults>
</compile_context>

<pallas_src>
import functools

import jax
import jax.numpy as jnp
from jax import lax
from jax.experimental import pallas as pl
from jax.experimental.pallas import tpu as pltpu


def _cnn_self_attn_kernel(x_ref, wq_ref, bq_ref, wk_ref, bk_ref, wv_ref, bv_ref,
                          gamma_ref, o_ref, *, n_channels):
    x = x_ref[...]                                                      # (C, N) f32

    # 1x1 convolutions == channel matmuls (bias broadcast over N).
    # Fold 1/sqrt(C) into q so the scale touches a (Cqk, N) tensor, not (N, N).
    inv_sqrt_c = 1.0 / jnp.sqrt(jnp.float32(n_channels))
    q = (jnp.dot(wq_ref[...], x, preferred_element_type=jnp.float32)
         + bq_ref[...]) * inv_sqrt_c                                    # (Cqk, N)
    k = jnp.dot(wk_ref[...], x, preferred_element_type=jnp.float32) + bk_ref[...]
    v = jnp.dot(wv_ref[...], x, preferred_element_type=jnp.float32) + bv_ref[...]

    # energy[i, j] = sum_c q[c, i] * k[c, j]   (matches bmm(Q^T, K)).
    # Contract the channel dim directly -- no (N, N) transpose is ever built.
    # bf16 operands, f32 accumulation.
    energy = lax.dot_general(
        q.astype(jnp.bfloat16), k.astype(jnp.bfloat16),
        (((0,), (0,)), ((), ())),
        preferred_element_type=jnp.float32)                             # (N, N) f32

    # Numerically stable softmax with normalization deferred past the second
    # matmul (no N^2 divides; max/exp kept in f32).
    m = jnp.max(energy, axis=-1, keepdims=True)                         # (N, 1)
    p = jnp.exp(energy - m)                                             # (N, N) f32
    p16 = p.astype(jnp.bfloat16)

    # out_unnorm[c, i] = sum_j v[c, j] * p[i, j]   (matches bmm(V, A^T), unnormalized).
    out_unnorm = lax.dot_general(
        v.astype(jnp.bfloat16), p16, (((1,), (1,)), ((), ())),
        preferred_element_type=jnp.float32)                             # (C, N) f32

    # Row sums of p produced lane-major as (1, N) via a ones-row matmul: the
    # N^2 reduction rides the MXU and the later per-column broadcast over
    # channels needs no relayout.  Denominator >= 1 (exp(0) term), so the
    # approx reciprocal is safe.
    ones_row = jnp.ones((1, p16.shape[-1]), jnp.bfloat16)
    denom = lax.dot_general(
        ones_row, p16, (((1,), (1,)), ((), ())),
        preferred_element_type=jnp.float32)                             # (1, N) f32
    inv_denom = pl.reciprocal(denom, approx=True)                       # EUP slot

    out = out_unnorm * inv_denom                                        # (C, N)

    gamma = gamma_ref[0]                                                # scalar from SMEM
    o_ref[...] = gamma * out + x


def cnn_self_attention(x, params):
    """x: (B, C, W, H) float32.  params: (wq, bq, wk, bk, wv, bv, gamma)."""
    B, C, W, H = x.shape
    N = W * H
    wq, bq, wk, bk, wv, bv, gamma = params
    Cqk = wq.shape[0]

    x_flat = x.reshape(B, C, N)
    kernel = functools.partial(_cnn_self_attn_kernel, n_channels=C)

    # Scoped-VMEM budget sized from the (N, N) softmax intermediates
    # (energy f32 + p f32 + p bf16 ~ 10 B/elem, plus q/k/v and the x/out
    # blocks), clamped to stay inside physical VMEM on all generations.
    vmem_bytes = int(min(100 * 1024 * 1024,
                         max(32 * 1024 * 1024,
                             12 * N * N + 16 * C * N * 4 + (1 << 20))))

    out_flat = pl.pallas_call(
        kernel,
        out_shape=jax.ShapeDtypeStruct((B, C, N), jnp.float32),
        grid_spec=pltpu.PrefetchScalarGridSpec(
            num_scalar_prefetch=0,
            grid=(B,),
            in_specs=[
                pl.BlockSpec((pl.Squeezed(), C, N), lambda b: (b, 0, 0)),  # x -> (C, N)
                pl.BlockSpec((Cqk, C), lambda b: (0, 0)),                  # Wq
                pl.BlockSpec((Cqk, 1), lambda b: (0, 0)),                  # bq
                pl.BlockSpec((Cqk, C), lambda b: (0, 0)),                  # Wk
                pl.BlockSpec((Cqk, 1), lambda b: (0, 0)),                  # bk
                pl.BlockSpec((C, C), lambda b: (0, 0)),                    # Wv
                pl.BlockSpec((C, 1), lambda b: (0, 0)),                    # bv
                pl.BlockSpec(memory_space=pltpu.MemorySpace.SMEM),         # gamma (scalar)
            ],
            out_specs=pl.BlockSpec((pl.Squeezed(), C, N), lambda b: (b, 0, 0)),
        ),
        compiler_params=pltpu.CompilerParams(
            dimension_semantics=("parallel",),
            vmem_limit_bytes=vmem_bytes),
    )(x_flat, wq, bq, wk, bk, wv, bv, gamma)

    return out_flat.reshape(B, C, W, H)


def _reference(x, params):
    """Pure-JAX re-implementation of the PyTorch forward for verification."""
    wq, bq, wk, bk, wv, bv, gamma = params
    B, C, W, H = x.shape
    N = W * H
    xf = x.reshape(B, C, N)
    q = jnp.einsum("oc,bcn->bon", wq, xf) + bq[None]        # (B, Cqk, N)
    k = jnp.einsum("oc,bcn->bon", wk, xf) + bk[None]        # (B, Cqk, N)
    v = jnp.einsum("oc,bcn->bon", wv, xf) + bv[None]        # (B, C,   N)
    energy = jnp.einsum("bci,bcj->bij", q, k)               # (B, N, N)
    attn = jax.nn.softmax(energy / jnp.sqrt(jnp.float32(C)), axis=-1)
    out = jnp.einsum("bcj,bij->bci", v, attn)               # (B, C, N)
    out = out.reshape(B, C, W, H)
    return gamma[0] * out + x


if __name__ == "__main__":
    B, C, W, H = 2, 4, 16, 16
    n_heads = 2
    Cqk = C // n_heads

    key = jax.random.PRNGKey(0)
    kx, k1, k2, k3, k4, k5, k6 = jax.random.split(key, 7)

    # Conv2d(kernel_size=1) default init: uniform(-1/sqrt(fan_in), 1/sqrt(fan_in)), fan_in = C.
    bound = 1.0 / (C ** 0.5)
    wq = jax.random.uniform(k1, (Cqk, C), jnp.float32, -bound, bound)
    bq = jax.random.uniform(k2, (Cqk, 1), jnp.float32, -bound, bound)
    wk = jax.random.uniform(k3, (Cqk, C), jnp.float32, -bound, bound)
    bk = jax.random.uniform(k4, (Cqk, 1), jnp.float32, -bound, bound)
    wv = jax.random.uniform(k5, (C, C), jnp.float32, -bound, bound)
    bv = jax.random.uniform(k6, (C, 1), jnp.float32, -bound, bound)
    gamma0 = jnp.zeros((1,), jnp.float32)          # faithful to module __init__ (gamma = 0)
    gamma1 = jnp.full((1,), 0.5, jnp.float32)      # nonzero-gamma check to exercise the attention path

    x = jax.random.normal(kx, (B, C, W, H), jnp.float32)

    # Module-faithful gamma = 0: output must equal x exactly.
    params0 = (wq, bq, wk, bk, wv, bv, gamma0)
    out0 = jax.block_until_ready(cnn_self_attention(x, params0))
    ref0 = _reference(x, params0)
    assert jnp.allclose(out0, ref0, atol=1e-6, rtol=1e-6)

    # gamma != 0: attention path contributes; tolerance loosened for the bf16
    # MXU operands + approx reciprocal (softmax statistics kept in f32).
    params1 = (wq, bq, wk, bk, wv, bv, gamma1)
    out1 = jax.block_until_ready(cnn_self_attention(x, params1))
    ref1 = _reference(x, params1)
    assert jnp.allclose(out1, ref1, atol=2e-2, rtol=2e-2)

    print("KERNEL_OK")
</pallas_src>

<mosaic_0001>
module attributes {stable_mosaic.version = 11 : i64} {
  func.func @_cnn_self_attn_kernel(%arg0: i32, %arg1: memref<1x4x256xf32, #tpu.memory_space<vmem>>, %arg2: memref<2x4xf32, #tpu.memory_space<vmem>>, %arg3: memref<2x1xf32, #tpu.memory_space<vmem>>, %arg4: memref<2x4xf32, #tpu.memory_space<vmem>>, %arg5: memref<2x1xf32, #tpu.memory_space<vmem>>, %arg6: memref<4x4xf32, #tpu.memory_space<vmem>>, %arg7: memref<4x1xf32, #tpu.memory_space<vmem>>, %arg8: memref<1xf32, #tpu.memory_space<smem>>, %arg9: memref<1x4x256xf32, #tpu.memory_space<vmem>>) attributes {dimension_semantics = [#tpu.dimension_semantics<parallel>], iteration_bounds = array<i64: 2>, scalar_prefetch = 0 : i64, scratch_operands = 0 : i64, tpu.core_type = #tpu.core_type<tc>, window_params = [{transform_indices = @transform_0, window_bounds = array<i64: 1, 4, 256>}, {pipeline_mode = #tpu.pipeline_mode<synchronous>, transform_indices = @transform_1, window_bounds = array<i64: 2, 4>}, {pipeline_mode = #tpu.pipeline_mode<synchronous>, transform_indices = @transform_2, window_bounds = array<i64: 2, 1>}, {pipeline_mode = #tpu.pipeline_mode<synchronous>, transform_indices = @transform_3, window_bounds = array<i64: 2, 4>}, {pipeline_mode = #tpu.pipeline_mode<synchronous>, transform_indices = @transform_4, window_bounds = array<i64: 2, 1>}, {pipeline_mode = #tpu.pipeline_mode<synchronous>, transform_indices = @transform_5, window_bounds = array<i64: 4, 4>}, {pipeline_mode = #tpu.pipeline_mode<synchronous>, transform_indices = @transform_6, window_bounds = array<i64: 4, 1>}, {transform_indices = @transform_7, window_bounds = array<i64: 1>}, {transform_indices = @transform_8, window_bounds = array<i64: 1, 4, 256>}]} {
    %c0 = arith.constant 0 : index
    %c0_0 = arith.constant 0 : index
    %c0_1 = arith.constant 0 : index
    %0 = vector.load %arg1[%c0, %c0_0, %c0_1] : memref<1x4x256xf32, #tpu.memory_space<vmem>>, vector<1x4x256xf32>
    %1 = vector.shape_cast %0 : vector<1x4x256xf32> to vector<4x256xf32>
    %cst = arith.constant 4.000000e+00 : f32
    %2 = math.sqrt %cst : f32
    %cst_2 = arith.constant 1.000000e+00 : f32
    %3 = arith.divf %cst_2, %2 : f32
    %c0_3 = arith.constant 0 : index
    %c0_4 = arith.constant 0 : index
    %4 = vector.load %arg2[%c0_3, %c0_4] : memref<2x4xf32, #tpu.memory_space<vmem>>, vector<2x4xf32>
    %cst_5 = arith.constant dense<0.000000e+00> : vector<2x256xf32>
    %5 = tpu.matmul %4, %1, %cst_5 {dimension_numbers = #tpu.dot_dimension_numbers<[1], [0], [0], [1], [0, 0, 1, 1], [], []>} : vector<2x4xf32>, vector<4x256xf32>, vector<2x256xf32> -> vector<2x256xf32>
    %c0_6 = arith.constant 0 : index
    %c0_7 = arith.constant 0 : index
    %6 = vector.load %arg3[%c0_6, %c0_7] : memref<2x1xf32, #tpu.memory_space<vmem>>, vector<2x1xf32>
    %7 = vector.broadcast %6 : vector<2x1xf32> to vector<2x256xf32>
    %8 = arith.addf %5, %7 : vector<2x256xf32>
    %9 = vector.broadcast %3 : f32 to vector<2x256xf32>
    %10 = arith.mulf %8, %9 : vector<2x256xf32>
    %c0_8 = arith.constant 0 : index
    %c0_9 = arith.constant 0 : index
    %11 = vector.load %arg4[%c0_8, %c0_9] : memref<2x4xf32, #tpu.memory_space<vmem>>, vector<2x4xf32>
    %cst_10 = arith.constant dense<0.000000e+00> : vector<2x256xf32>
    %12 = tpu.matmul %11, %1, %cst_10 {dimension_numbers = #tpu.dot_dimension_numbers<[1], [0], [0], [1], [0, 0, 1, 1], [], []>} : vector<2x4xf32>, vector<4x256xf32>, vector<2x256xf32> -> vector<2x256xf32>
    %c0_11 = arith.constant 0 : index
    %c0_12 = arith.constant 0 : index
    %13 = vector.load %arg5[%c0_11, %c0_12] : memref<2x1xf32, #tpu.memory_space<vmem>>, vector<2x1xf32>
    %14 = vector.broadcast %13 : vector<2x1xf32> to vector<2x256xf32>
    %15 = arith.addf %12, %14 : vector<2x256xf32>
    %c0_13 = arith.constant 0 : index
    %c0_14 = arith.constant 0 : index
    %16 = vector.load %arg6[%c0_13, %c0_14] : memref<4x4xf32, #tpu.memory_space<vmem>>, vector<4x4xf32>
    %cst_15 = arith.constant dense<0.000000e+00> : vector<4x256xf32>
    %17 = tpu.matmul %16, %1, %cst_15 {dimension_numbers = #tpu.dot_dimension_numbers<[1], [0], [0], [1], [0, 0, 1, 1], [], []>} : vector<4x4xf32>, vector<4x256xf32>, vector<4x256xf32> -> vector<4x256xf32>
    %c0_16 = arith.constant 0 : index
    %c0_17 = arith.constant 0 : index
    %18 = vector.load %arg7[%c0_16, %c0_17] : memref<4x1xf32, #tpu.memory_space<vmem>>, vector<4x1xf32>
    %19 = vector.broadcast %18 : vector<4x1xf32> to vector<4x256xf32>
    %20 = arith.addf %17, %19 : vector<4x256xf32>
    %21 = arith.truncf %10 : vector<2x256xf32> to vector<2x256xbf16>
    %22 = arith.truncf %15 : vector<2x256xf32> to vector<2x256xbf16>
    %cst_18 = arith.constant dense<0.000000e+00> : vector<256x256xf32>
    %23 = tpu.matmul %21, %22, %cst_18 {dimension_numbers = #tpu.dot_dimension_numbers<[0], [0], [1], [1], [0, 1, 1, 1], [], []>} : vector<2x256xbf16>, vector<2x256xbf16>, vector<256x256xf32> -> vector<256x256xf32>
    %cst_19 = arith.constant dense<0xFF800000> : vector<256xf32>
    %24 = vector.multi_reduction <maximumf>, %23, %cst_19 [1] : vector<256x256xf32> to vector<256xf32>
    %25 = vector.shape_cast %24 : vector<256xf32> to vector<256x1xf32>
    %26 = vector.broadcast %25 : vector<256x1xf32> to vector<256x256xf32>
    %27 = arith.subf %23, %26 : vector<256x256xf32>
    %28 = math.exp %27 : vector<256x256xf32>
    %29 = arith.truncf %28 : vector<256x256xf32> to vector<256x256xbf16>
    %30 = arith.truncf %20 : vector<4x256xf32> to vector<4x256xbf16>
    %cst_20 = arith.constant dense<0.000000e+00> : vector<4x256xf32>
    %31 = tpu.matmul %30, %29, %cst_20 {dimension_numbers = #tpu.dot_dimension_numbers<[1], [1], [0], [0], [0, 0, 1, 0], [], []>} : vector<4x256xbf16>, vector<256x256xbf16>, vector<4x256xf32> -> vector<4x256xf32>
    %cst_21 = arith.constant 1.000000e+00 : bf16
    %32 = vector.broadcast %cst_21 : bf16 to vector<1x256xbf16>
    %cst_22 = arith.constant dense<0.000000e+00> : vector<1x256xf32>
    %33 = tpu.matmul %32, %29, %cst_22 {dimension_numbers = #tpu.dot_dimension_numbers<[1], [1], [0], [0], [0, 0, 1, 0], [], []>} : vector<1x256xbf16>, vector<256x256xbf16>, vector<1x256xf32> -> vector<1x256xf32>
    %34 = tpu.reciprocal %33 {approx = true} : vector<1x256xf32> -> vector<1x256xf32>
    %35 = vector.broadcast %34 : vector<1x256xf32> to vector<4x256xf32>
    %36 = arith.mulf %31, %35 : vector<4x256xf32>
    %c0_23 = arith.constant 0 : index
    %37 = memref.load %arg8[%c0_23] : memref<1xf32, #tpu.memory_space<smem>>
    %38 = vector.broadcast %37 : f32 to vector<4x256xf32>
    %39 = arith.mulf %38, %36 : vector<4x256xf32>
    %40 = arith.addf %39, %1 : vector<4x256xf32>
    %c0_24 = arith.constant 0 : index
    %c0_25 = arith.constant 0 : index
    %c0_26 = arith.constant 0 : index
    %41 = vector.load %arg9[%c0_24, %c0_25, %c0_26] : memref<1x4x256xf32, #tpu.memory_space<vmem>>, vector<1x4x256xf32>
    %42 = vector.shape_cast %41 : vector<1x4x256xf32> to vector<4x256xf32>
    %43 = vector.shape_cast %40 : vector<4x256xf32> to vector<1x4x256xf32>
    tpu.vector_store %arg9[%c0_24, %c0_25, %c0_26], %43 {strides = array<i32>} : memref<1x4x256xf32, #tpu.memory_space<vmem>>, vector<1x4x256xf32>,
    return
  }
  func.func @transform_0(%arg0: i32) -> (i32, i32, i32) {
    %c0_i32 = arith.constant 0 : i32
    %c0_i32_0 = arith.constant 0 : i32
    %c0_i32_1 = arith.constant 0 : i32
    return %arg0, %c0_i32, %c0_i32_0 : i32, i32, i32
  }
  func.func @transform_1(%arg0: i32) -> (i32, i32) {
    %c0_i32 = arith.constant 0 : i32
    %c0_i32_0 = arith.constant 0 : i32
    %c0_i32_1 = arith.constant 0 : i32
    return %c0_i32, %c0_i32_0 : i32, i32
  }
  func.func @transform_2(%arg0: i32) -> (i32, i32) {
    %c0_i32 = arith.constant 0 : i32
    %c0_i32_0 = arith.constant 0 : i32
    %c0_i32_1 = arith.constant 0 : i32
    return %c0_i32, %c0_i32_0 : i32, i32
  }
  func.func @transform_3(%arg0: i32) -> (i32, i32) {
    %c0_i32 = arith.constant 0 : i32
    %c0_i32_0 = arith.constant 0 : i32
    %c0_i32_1 = arith.constant 0 : i32
    return %c0_i32, %c0_i32_0 : i32, i32
  }
  func.func @transform_4(%arg0: i32) -> (i32, i32) {
    %c0_i32 = arith.constant 0 : i32
    %c0_i32_0 = arith.constant 0 : i32
    %c0_i32_1 = arith.constant 0 : i32
    return %c0_i32, %c0_i32_0 : i32, i32
  }
  func.func @transform_5(%arg0: i32) -> (i32, i32) {
    %c0_i32 = arith.constant 0 : i32
    %c0_i32_0 = arith.constant 0 : i32
    %c0_i32_1 = arith.constant 0 : i32
    return %c0_i32, %c0_i32_0 : i32, i32
  }
  func.func @transform_6(%arg0: i32) -> (i32, i32) {
    %c0_i32 = arith.constant 0 : i32
    %c0_i32_0 = arith.constant 0 : i32
    %c0_i32_1 = arith.constant 0 : i32
    return %c0_i32, %c0_i32_0 : i32, i32
  }
  func.func @transform_7(%arg0: i32) -> i32 {
    %c0_i32 = arith.constant 0 : i32
    %c0_i32_0 = arith.constant 0 : i32
    return %c0_i32 : i32
  }
  func.func @transform_8(%arg0: i32) -> (i32, i32, i32) {
    %c0_i32 = arith.constant 0 : i32
    %c0_i32_0 = arith.constant 0 : i32
    %c0_i32_1 = arith.constant 0 : i32
    return %arg0, %c0_i32, %c0_i32_0 : i32, i32, i32
  }
}

</mosaic_0001>

<llo_original>
// kernel: tpu_custom_call.1
$region0: #{tpu_custom_call.1}
  #allocation0 [shape = 'u32[]', space=smem, size = 0x4, offset = 0x4, fixed_abs, tag = 'smem constant byte address 0x4 - core index']
  #allocation1 [shape = 'u32[72,128]{1,0:T(1,128)}', space=vmem, size = 0x9000, scoped, tag = 'internal scratch']
  #allocation2 [shape = 'f32[1]{0:T(128)S(6)}', space=smem, size = 0x200, scoped, tag = 'scoped memory for tpu_custom_call.1']
  %s0 = inlined_call_operand.hbm [shape: f32[2,4,256], index: 0, kind: input, shape index: {}]
  %s1 = inlined_call_operand.vmem [shape: f32[2,4], index: 1, kind: input, shape index: {}]
  %s2 = inlined_call_operand.vmem [shape: f32[2,1], index: 2, kind: input, shape index: {}]
  %s3 = inlined_call_operand.vmem [shape: f32[2,4], index: 3, kind: input, shape index: {}]
  %s4 = inlined_call_operand.vmem [shape: f32[2,1], index: 4, kind: input, shape index: {}]
  %s5 = inlined_call_operand.vmem [shape: f32[4,4], index: 5, kind: input, shape index: {}]
  %s6 = inlined_call_operand.vmem [shape: f32[4,1], index: 6, kind: input, shape index: {}]
  %s7 = inlined_call_operand.<no memory space> [shape: f32[1], index: 7, kind: input, shape index: {}]
  %s8 = inlined_call_operand.hbm [shape: f32[2,4,256], index: 8, kind: output, shape index: {}]
  %s9 = sld [smem:[#allocation0]]
  $region69: #{tpu_custom_call.1} parent=0
    _
  %s11 = ssub.s32 1, %s9
  %s12 = scalar_select 0, %s11, %s9
  %13 = sst [smem:[#allocation2]] %s7
  $region1: #{tpu_custom_call.1} parent=0
    #allocation3 [shape = 'u8[8192]{0}', space=vmem, size = 0x2000, scoped, tag = 'input window, operand 0']
    #allocation4 [shape = 's32[2]{0}', space=sflag, size = 0x8, scoped, tag = 'scoped memory for tpu_custom_call.1']
    #allocation5 [shape = 's32[2]{0}', space=sflag, size = 0x8, scoped, tag = 'scoped memory for tpu_custom_call.1']
    #allocation6 [shape = 'u8[8192]{0}', space=vmem, size = 0x2000, scoped, tag = 'output window, operand 0']
    %14 = vsyncpa [#allocation4], 0
    %s15 = scalar_lea.sflag [#allocation4], 1
    %16 = vsyncpa %s15, 0
    %17 = vsyncpa [#allocation5], 0
    %s18 = scalar_lea.sflag [#allocation5], 1
    %19 = vsyncpa %s18, 0
    loop: start=0, step=1, limit=4
    $region2: #{tpu_custom_call.1} parent=1 // loop_pre_header
      _
    $region3: #{tpu_custom_call.1} parent=1 // loop_header
      %s21 = sphi 0, %s25
      %p22 = scmp.ge.s32.totalorder %s21, 4
      %s31 = sphi 0, %s33
      %s34 = sphi 0, %s31
      %s35 = sphi 0, %s34
      %s51 = sphi 0, %s35
      %s55 = sphi 0, %s55
      %s57 = sphi 0, %s55
      %s58 = sphi 0, %s57
      %s72 = sphi 0, %s58
      %s76 = sphi 0, %s76
      %s78 = sphi 0, %s76
      %s79 = sphi 0, %s78
      %s93 = sphi 0, %s79
      %s97 = sphi 0, %s97
      %s99 = sphi 0, %s97
      %s100 = sphi 0, %s99
      %s114 = sphi 0, %s100
      %s118 = sphi 0, %s118
      %s120 = sphi 0, %s118
      %s121 = sphi 0, %s120
      %s135 = sphi 0, %s121
      %s139 = sphi 0, %s139
      %s141 = sphi 0, %s139
      %s142 = sphi 0, %s141
      %s156 = sphi 0, %s142
      %s160 = sphi 0, %s160
      %s162 = sphi 0, %s160
      %s163 = sphi 0, %s162
      %s177 = sphi 0, %s163
      %s181 = sphi 0, %s181
      %s183 = sphi 0, %s181
      %s184 = sphi 0, %s183
      %s198 = sphi 0, %s184
      %s204 = sphi 0, %s206
      %s207 = sphi 0, %s204
      %s208 = sphi 0, %s207
      %s224 = sphi 0, %s208
    $region4: #{tpu_custom_call.1} parent=1 // loop_header_branch
      %24 = sbr.rel (%p22) target = $region8
    $region5: #{tpu_custom_call.1} parent=1 // loop_body
      %s26 = ssub.s32 %s21, 1
      %s27 = ssub.s32 %s21, 2
      %s28 = sadd.s32 %s21, 1
      %s29 = ssub.s32 %s21, %s28
      %p30 = scmp.eq.s32.totalorder %s29, 0
      %s32 = sadd.s32 %s31, 1
      %s33 = scalar_select %p30, %s31, %s32
      %p36 = pneg %p30
      %p37 = scmp.eq.s32.totalorder %s21, 1
      %p38 = por %p36, %p37
      %p39 = scmp.ne.s32.totalorder %s31, %s34
      %p40 = scmp.eq.s32.totalorder %s21, 0
      %p41 = por %p39, %p40
      %p42 = scmp.ne.s32.totalorder %s31, %s34
      %p43 = scmp.eq.s32.totalorder %s26, 1
      %p44 = por %p42, %p43
      %p45 = scmp.ne.s32.totalorder %s34, %s35
      %p46 = scmp.eq.s32.totalorder %s26, 0
      %p47 = por %p45, %p46
      %p48 = scmp.ne.s32.totalorder %s34, %s35
      %p49 = scmp.eq.s32.totalorder %s27, 1
      %p50 = por %p48, %p49
      %p52 = scmp.ne.s32.totalorder %s35, %s51
      %p53 = scmp.eq.s32.totalorder %s27, 0
      %p54 = por %p52, %p53
      %s56 = sadd.s32 %s55, 1
      %p59 = scmp.eq.s32.totalorder %s21, 1
      %p60 = scmp.ne.s32.totalorder %s55, %s57
      %p61 = scmp.eq.s32.totalorder %s21, 0
      %p62 = por %p60, %p61
      %p63 = scmp.ne.s32.totalorder %s55, %s57
      %p64 = scmp.eq.s32.totalorder %s26, 1
      %p65 = por %p63, %p64
      %p66 = scmp.ne.s32.totalorder %s57, %s58
      %p67 = scmp.eq.s32.totalorder %s26, 0
      %p68 = por %p66, %p67
      %p69 = scmp.ne.s32.totalorder %s57, %s58
      %p70 = scmp.eq.s32.totalorder %s27, 1
      %p71 = por %p69, %p70
      %p73 = scmp.ne.s32.totalorder %s58, %s72
      %p74 = scmp.eq.s32.totalorder %s27, 0
      %p75 = por %p73, %p74
      %s77 = sadd.s32 %s76, 1
      %p80 = scmp.eq.s32.totalorder %s21, 1
      %p81 = scmp.ne.s32.totalorder %s76, %s78
      %p82 = scmp.eq.s32.totalorder %s21, 0
      %p83 = por %p81, %p82
      %p84 = scmp.ne.s32.totalorder %s76, %s78
      %p85 = scmp.eq.s32.totalorder %s26, 1
      %p86 = por %p84, %p85
      %p87 = scmp.ne.s32.totalorder %s78, %s79
      %p88 = scmp.eq.s32.totalorder %s26, 0
      %p89 = por %p87, %p88
      %p90 = scmp.ne.s32.totalorder %s78, %s79
      %p91 = scmp.eq.s32.totalorder %s27, 1
      %p92 = por %p90, %p91
      %p94 = scmp.ne.s32.totalorder %s79, %s93
      %p95 = scmp.eq.s32.totalorder %s27, 0
      %p96 = por %p94, %p95
      %s98 = sadd.s32 %s97, 1
      %p101 = scmp.eq.s32.totalorder %s21, 1
      %p102 = scmp.ne.s32.totalorder %s97, %s99
      %p103 = scmp.eq.s32.totalorder %s21, 0
      %p104 = por %p102, %p103
      %p105 = scmp.ne.s32.totalorder %s97, %s99
      %p106 = scmp.eq.s32.totalorder %s26, 1
      %p107 = por %p105, %p106
      %p108 = scmp.ne.s32.totalorder %s99, %s100
      %p109 = scmp.eq.s32.totalorder %s26, 0
      %p110 = por %p108, %p109
      %p111 = scmp.ne.s32.totalorder %s99, %s100
      %p112 = scmp.eq.s32.totalorder %s27, 1
      %p113 = por %p111, %p112
      %p115 = scmp.ne.s32.totalorder %s100, %s114
      %p116 = scmp.eq.s32.totalorder %s27, 0
      %p117 = por %p115, %p116
      %s119 = sadd.s32 %s118, 1
      %p122 = scmp.eq.s32.totalorder %s21, 1
      %p123 = scmp.ne.s32.totalorder %s118, %s120
      %p124 = scmp.eq.s32.totalorder %s21, 0
      %p125 = por %p123, %p124
      %p126 = scmp.ne.s32.totalorder %s118, %s120
      %p127 = scmp.eq.s32.totalorder %s26, 1
      %p128 = por %p126, %p127
      %p129 = scmp.ne.s32.totalorder %s120, %s121
      %p130 = scmp.eq.s32.totalorder %s26, 0
      %p131 = por %p129, %p130
      %p132 = scmp.ne.s32.totalorder %s120, %s121
      %p133 = scmp.eq.s32.totalorder %s27, 1
      %p134 = por %p132, %p133
      %p136 = scmp.ne.s32.totalorder %s121, %s135
      %p137 = scmp.eq.s32.totalorder %s27, 0
      %p138 = por %p136, %p137
      %s140 = sadd.s32 %s139, 1
      %p143 = scmp.eq.s32.totalorder %s21, 1
      %p144 = scmp.ne.s32.totalorder %s139, %s141
      %p145 = scmp.eq.s32.totalorder %s21, 0
      %p146 = por %p144, %p145
      %p147 = scmp.ne.s32.totalorder %s139, %s141
      %p148 = scmp.eq.s32.totalorder %s26, 1
      %p149 = por %p147, %p148
      %p150 = scmp.ne.s32.totalorder %s141, %s142
      %p151 = scmp.eq.s32.totalorder %s26, 0
      %p152 = por %p150, %p151
      %p153 = scmp.ne.s32.totalorder %s141, %s142
      %p154 = scmp.eq.s32.totalorder %s27, 1
      %p155 = por %p153, %p154
      %p157 = scmp.ne.s32.totalorder %s142, %s156
      %p158 = scmp.eq.s32.totalorder %s27, 0
      %p159 = por %p157, %p158
      %s161 = sadd.s32 %s160, 1
      %p164 = scmp.eq.s32.totalorder %s21, 1
      %p165 = scmp.ne.s32.totalorder %s160, %s162
      %p166 = scmp.eq.s32.totalorder %s21, 0
      %p167 = por %p165, %p166
      %p168 = scmp.ne.s32.totalorder %s160, %s162
      %p169 = scmp.eq.s32.totalorder %s26, 1
      %p170 = por %p168, %p169
      %p171 = scmp.ne.s32.totalorder %s162, %s163
      %p172 = scmp.eq.s32.totalorder %s26, 0
      %p173 = por %p171, %p172
      %p174 = scmp.ne.s32.totalorder %s162, %s163
      %p175 = scmp.eq.s32.totalorder %s27, 1
      %p176 = por %p174, %p175
      %p178 = scmp.ne.s32.totalorder %s163, %s177
      %p179 = scmp.eq.s32.totalorder %s27, 0
      %p180 = por %p178, %p179
      %s182 = sadd.s32 %s181, 1
      %p185 = scmp.eq.s32.totalorder %s21, 1
      %p186 = scmp.ne.s32.totalorder %s181, %s183
      %p187 = scmp.eq.s32.totalorder %s21, 0
      %p188 = por %p186, %p187
      %p189 = scmp.ne.s32.totalorder %s181, %s183
      %p190 = scmp.eq.s32.totalorder %s26, 1
      %p191 = por %p189, %p190
      %p192 = scmp.ne.s32.totalorder %s183, %s184
      %p193 = scmp.eq.s32.totalorder %s26, 0
      %p194 = por %p192, %p193
      %p195 = scmp.ne.s32.totalorder %s183, %s184
      %p196 = scmp.eq.s32.totalorder %s27, 1
      %p197 = por %p195, %p196
      %p199 = scmp.ne.s32.totalorder %s184, %s198
      %p200 = scmp.eq.s32.totalorder %s27, 0
      %p201 = por %p199, %p200
      %s202 = ssub.s32 %s21, %s28
      %p203 = scmp.eq.s32.totalorder %s202, 0
      %s205 = sadd.s32 %s204, 1
      %s206 = scalar_select %p203, %s204, %s205
      %p209 = pneg %p203
      %p210 = scmp.eq.s32.totalorder %s21, 1
      %p211 = por %p209, %p210
      %p212 = scmp.ne.s32.totalorder %s204, %s207
      %p213 = scmp.eq.s32.totalorder %s21, 0
      %p214 = por %p212, %p213
      %p215 = scmp.ne.s32.totalorder %s204, %s207
      %p216 = scmp.eq.s32.totalorder %s26, 1
      %p217 = por %p215, %p216
      %p218 = scmp.ne.s32.totalorder %s207, %s208
      %p219 = scmp.eq.s32.totalorder %s26, 0
      %p220 = por %p218, %p219
      %p221 = scmp.ne.s32.totalorder %s207, %s208
      %p222 = scmp.eq.s32.totalorder %s27, 1
      %p223 = por %p221, %p222
      %p225 = scmp.ne.s32.totalorder %s208, %s224
      %p226 = scmp.eq.s32.totalorder %s27, 0
      %p227 = por %p225, %p226
      %p228 = scmp.le.s32.totalorder 1, %s21
      %p229 = scmp.lt.s32.totalorder %s21, 3
      %p230 = pnand %p228, %p229
      %p231 = pneg %p230
      // Predicated region
      $region9: #{tpu_custom_call.1} parent=5 // pred_check
        _
      $region10: #{tpu_custom_call.1} parent=5 // pred_check_branch
        %233 = sbr.rel (%p230) target = $region12
      $region11: #{tpu_custom_call.1} parent=5 // pred_region
        %s234 = ssub.s32 %s21, 1
        // Predicated region
        $region13: #{tpu_custom_call.1} parent=11 // pred_check
          %p235 = pneg %p68
        $region14: #{tpu_custom_call.1} parent=11 // pred_check_branch
          %237 = sbr.rel (%p235) target = $region16
        $region15: #{tpu_custom_call.1} parent=11 // pred_region
          _
        $region16: #{tpu_custom_call.1} parent=11 // pred_fallthru
          _
        // Predicated region
        $region17: #{tpu_custom_call.1} parent=11 // pred_check
          %p238 = pneg %p89
        $region18: #{tpu_custom_call.1} parent=11 // pred_check_branch
          %240 = sbr.rel (%p238) target = $region20
        $region19: #{tpu_custom_call.1} parent=11 // pred_region
          _
        $region20: #{tpu_custom_call.1} parent=11 // pred_fallthru
          _
        // Predicated region
        $region21: #{tpu_custom_call.1} parent=11 // pred_check
          %p241 = pneg %p110
        $region22: #{tpu_custom_call.1} parent=11 // pred_check_branch
          %243 = sbr.rel (%p241) target = $region24
        $region23: #{tpu_custom_call.1} parent=11 // pred_region
          _
        $region24: #{tpu_custom_call.1} parent=11 // pred_fallthru
          _
        // Predicated region
        $region25: #{tpu_custom_call.1} parent=11 // pred_check
          %p244 = pneg %p131
        $region26: #{tpu_custom_call.1} parent=11 // pred_check_branch
          %246 = sbr.rel (%p244) target = $region28
        $region27: #{tpu_custom_call.1} parent=11 // pred_region
          _
        $region28: #{tpu_custom_call.1} parent=11 // pred_fallthru
          _
        // Predicated region
        $region29: #{tpu_custom_call.1} parent=11 // pred_check
          %p247 = pneg %p152
        $region30: #{tpu_custom_call.1} parent=11 // pred_check_branch
          %249 = sbr.rel (%p247) target = $region32
        $region31: #{tpu_custom_call.1} parent=11 // pred_region
          _
        $region32: #{tpu_custom_call.1} parent=11 // pred_fallthru
          _
        // Predicated region
        $region33: #{tpu_custom_call.1} parent=11 // pred_check
          %p250 = pneg %p173
        $region34: #{tpu_custom_call.1} parent=11 // pred_check_branch
          %252 = sbr.rel (%p250) target = $region36
        $region35: #{tpu_custom_call.1} parent=11 // pred_region
          _
        $region36: #{tpu_custom_call.1} parent=11 // pred_fallthru
          _
        // Predicated region
        $region37: #{tpu_custom_call.1} parent=11 // pred_check
          %p253 = pneg %p194
        $region38: #{tpu_custom_call.1} parent=11 // pred_check_branch
          %255 = sbr.rel (%p253) target = $region40
        $region39: #{tpu_custom_call.1} parent=11 // pred_region
          _
        $region40: #{tpu_custom_call.1} parent=11 // pred_fallthru
          _
      $region12: #{tpu_custom_call.1} parent=5 // pred_fallthru
        _
      %p256 = scmp.lt.s32.totalorder %s21, 2
      // Predicated region
      $region41: #{tpu_custom_call.1} parent=5 // pred_check
        %p257 = pneg %p256
      $region42: #{tpu_custom_call.1} parent=5 // pred_check_branch
        %259 = sbr.rel (%p257) target = $region44
      $region43: #{tpu_custom_call.1} parent=5 // pred_region
        // Predicated region
        $region45: #{tpu_custom_call.1} parent=43 // pred_check
          %p260 = pneg %p41
        $region46: #{tpu_custom_call.1} parent=43 // pred_check_branch
          %262 = sbr.rel (%p260) target = $region48
        $region47: #{tpu_custom_call.1} parent=43 // pred_region
          %s263 = sand.u32 %s31, 1
          %s264 = scalar_lea.sflag [#allocation4], %s263
          %s265 = sand.u32 %s31, 1
          %s266 = smul.addr %s265, 8
          %s267 = scalar_lea.vmem [#allocation3], %s266
          %269 = vsyncadd %s264, 0
          %s270 = smul.addr %s21, 2
          %s271 = smul.addr %s270, 4
          %s272 = scalar_lea.hbm %s0, %s271
          %s274 = sshll.u32 %s272, 4
          %s275 = int_to_ptr.hbm [resolvable:$true] %s274
          %s276 = sshll.u32 %s267, 4
          %s277 = int_to_ptr.vmem [resolvable:$true] %s276
          %279 = dma.hbm_to_vmem [thread:$0]  %s275, 128, %s277, %s264
        $region48: #{tpu_custom_call.1} parent=43 // pred_fallthru
          _
      $region44: #{tpu_custom_call.1} parent=5 // pred_fallthru
        _
      %p280 = scmp.le.s32.totalorder 1, %s21
      %p281 = scmp.lt.s32.totalorder %s21, 3
      %p282 = pnand %p280, %p281
      %p283 = pneg %p282
      // Predicated region
      $region49: #{tpu_custom_call.1} parent=5 // pred_check
        _
      $region50: #{tpu_custom_call.1} parent=5 // pred_check_branch
        %285 = sbr.rel (%p282) target = $region52
      $region51: #{tpu_custom_call.1} parent=5 // pred_region
        %s286 = ssub.s32 %s21, 1
        %s287 = sand.u32 %s34, 1
        %s288 = scalar_lea.sflag [#allocation4], %s287
        %s289 = sand.u32 %s34, 1
        %s290 = smul.addr %s289, 8
        %s291 = scalar_lea.vmem [#allocation3], %s290
        // Predicated region
        $region53: #{tpu_custom_call.1} parent=51 // pred_check
          %p292 = pneg %p47
        $region54: #{tpu_custom_call.1} parent=51 // pred_check_branch
          %294 = sbr.rel (%p292) target = $region56
        $region55: #{tpu_custom_call.1} parent=51 // pred_region
          %296 = dma.done %s288, 128
        $region56: #{tpu_custom_call.1} parent=51 // pred_fallthru
          _
        %s297 = sand.u32 %s34, 1
        %s298 = scalar_lea.sflag [#allocation4], %s297
        %s299 = sand.u32 %s34, 1
        %s300 = smul.addr %s299, 8
        %s301 = scalar_lea.vmem [#allocation3], %s300
        %p302 = pneg %p47
        %p303 = pneg %p44
        %p304 = pneg %p68
        %p305 = pneg %p65
        %p306 = pneg %p89
        %p307 = pneg %p86
        %p308 = pneg %p110
        %p309 = pneg %p107
        %p310 = pneg %p131
        %p311 = pneg %p128
        %p312 = pneg %p152
        %p313 = pneg %p149
        %p314 = pneg %p173
        %p315 = pneg %p170
        %p316 = pneg %p194
        %p317 = pneg %p191
        %p318 = pneg %p220
        %p319 = pneg %p217
        %s320 = sand.u32 %s207, 1
        %s321 = scalar_lea.sflag [#allocation5], %s320
        %s322 = sand.u32 %s207, 1
        %s323 = smul.addr %s322, 8
        %s324 = scalar_lea.vmem [#allocation6], %s323
        %v327 = vld [vmem:[%s291] sm:$0xff]
        %v328 = vld [vmem:[%s1] sm:$0x3]
        %v329 = vld [vmem:[%s2] sm:$0x3]
        %331 = vset.pattern.permute.xlu0 0
        %332 = vperm.xlu0 %331, %v329
        %v333 = vpop.permute.xlu0 %332
        %336 = vst [vmem:[#allocation1] ss:$2 sm:$0xff] %v327
        %v337 = vld.sshfl [vmem:[#allocation1] sm:$0xff pattern:$0x75316420]
        %v338 = vld.sshfl [vmem:[#allocation1 + $0x8] sm:$0xff pattern:$0x75316420]
        %vm339 = vcmask 31744
        %v341 = vsel %vm339, %v328, 0
        %vm343 = vcmask 1043456
        %v344 = vsel %vm343, %v337, 0
        %v346 = vsel %vm343, %v338, 0
        %348 = vmatpush.msra.mxu0 0.0
        %349 = vmatpush.msra.mxu0 0.0
        %350 = vmatpush.msra.mxu0 0.0
        %351 = vmatpush.msra.mxu0 0.0
        %352 = vmatpush.msra.mxu0 0.0
        %353 = vmatpush.msra.mxu0 0.0
        %354 = vmatpush.msra.mxu0 0.0
        %355 = vmatpush.msra.mxu0 0.0
        %356 = vmatpush.msra.mxu0 0.0
        %357 = vmatpush.msra.mxu0 0.0
        %358 = vmatpush.msra.mxu0 0.0
        %359 = vmatpush.msra.mxu0 0.0
        %360 = vmatpush.msra.mxu0 0.0
        %361 = vmatpush.msra.mxu0 0.0
        %362 = vmatpush.msra.mxu0 0.0
        %363 = vmatpush.msra.mxu0 %v344
        %364 = vmatmul.f32.gmra.mxu0 %v341
        %v365 = vpop.f32.mrf.mxu0
        %v366 = vadd.f32 %v333, %v365
        %367 = vdwg.mxu0
        %368 = vmatpush.msra.mxu0 0.0
        %369 = vmatpush.msra.mxu0 0.0
        %370 = vmatpush.msra.mxu0 0.0
        %371 = vmatpush.msra.mxu0 0.0
        %372 = vmatpush.msra.mxu0 0.0
        %373 = vmatpush.msra.mxu0 0.0
        %374 = vmatpush.msra.mxu0 0.0
        %375 = vmatpush.msra.mxu0 0.0
        %376 = vmatpush.msra.mxu0 0.0
        %377 = vmatpush.msra.mxu0 0.0
        %378 = vmatpush.msra.mxu0 0.0
        %379 = vmatpush.msra.mxu0 0.0
        %380 = vmatpush.msra.mxu0 0.0
        %381 = vmatpush.msra.mxu0 0.0
        %382 = vmatpush.msra.mxu0 0.0
        %383 = vmatpush.msra.mxu0 %v346
        %384 = vmatmul.f32.gmra.mxu0 %v341
        %v385 = vpop.f32.mrf.mxu0
        %v386 = vadd.f32 %v333, %v385
        %387 = vdwg.mxu0
        %v388 = vmul.f32 %v366, 0.5
        %v389 = vmul.f32 %v386, 0.5
        %v390 = vld [vmem:[%s3] sm:$0x3]
        %v391 = vld [vmem:[%s4] sm:$0x3]
        %393 = vset.pattern.permute.xlu0 0
        %394 = vperm.xlu0 %393, %v391
        %v395 = vpop.permute.xlu0 %394
        %397 = vst [vmem:[#allocation1] ss:$2 sm:$0xff] %v327
        %v398 = vld.sshfl [vmem:[#allocation1] sm:$0xff pattern:$0x75316420]
        %v399 = vld.sshfl [vmem:[#allocation1 + $0x8] sm:$0xff pattern:$0x75316420]
        %v401 = vsel %vm339, %v390, 0
        %v403 = vsel %vm343, %v398, 0
        %v405 = vsel %vm343, %v399, 0
        %407 = vmatpush.msra.mxu0 0.0
        %408 = vmatpush.msra.mxu0 0.0
        %409 = vmatpush.msra.mxu0 0.0
        %410 = vmatpush.msra.mxu0 0.0
        %411 = vmatpush.msra.mxu0 0.0
        %412 = vmatpush.msra.mxu0 0.0
        %413 = vmatpush.msra.mxu0 0.0
        %414 = vmatpush.msra.mxu0 0.0
        %415 = vmatpush.msra.mxu0 0.0
        %416 = vmatpush.msra.mxu0 0.0
        %417 = vmatpush.msra.mxu0 0.0
        %418 = vmatpush.msra.mxu0 0.0
        %419 = vmatpush.msra.mxu0 0.0
        %420 = vmatpush.msra.mxu0 0.0
        %421 = vmatpush.msra.mxu0 0.0
        %422 = vmatpush.msra.mxu0 %v403
        %423 = vmatmul.f32.gmra.mxu0 %v401
        %v424 = vpop.f32.mrf.mxu0
        %v425 = vadd.f32 %v395, %v424
        %426 = vdwg.mxu0
        %427 = vmatpush.msra.mxu0 0.0
        %428 = vmatpush.msra.mxu0 0.0
        %429 = vmatpush.msra.mxu0 0.0
        %430 = vmatpush.msra.mxu0 0.0
        %431 = vmatpush.msra.mxu0 0.0
        %432 = vmatpush.msra.mxu0 0.0
        %433 = vmatpush.msra.mxu0 0.0
        %434 = vmatpush.msra.mxu0 0.0
        %435 = vmatpush.msra.mxu0 0.0
        %436 = vmatpush.msra.mxu0 0.0
        %437 = vmatpush.msra.mxu0 0.0
        %438 = vmatpush.msra.mxu0 0.0
        %439 = vmatpush.msra.mxu0 0.0
        %440 = vmatpush.msra.mxu0 0.0
        %441 = vmatpush.msra.mxu0 0.0
        %442 = vmatpush.msra.mxu0 %v405
        %443 = vmatmul.f32.gmra.mxu0 %v401
        %v444 = vpop.f32.mrf.mxu0
        %v445 = vadd.f32 %v395, %v444
        %446 = vdwg.mxu0
        %v447 = vld [vmem:[%s5] sm:$0xf]
        %v448 = vld [vmem:[%s6] sm:$0xf]
        %450 = vset.pattern.permute.xlu0 0
        %451 = vperm.xlu0 %450, %v448
        %v452 = vpop.permute.xlu0 %451
        %454 = vst [vmem:[#allocation1] ss:$2 sm:$0xff] %v327
        %v455 = vld.sshfl [vmem:[#allocation1] sm:$0xff pattern:$0x75316420]
        %v456 = vld.sshfl [vmem:[#allocation1 + $0x8] sm:$0xff pattern:$0x75316420]
        %v458 = vsel %vm339, %v447, 0
        %v460 = vsel %vm343, %v455, 0
        %v462 = vsel %vm343, %v456, 0
        %464 = vmatpush.msra.mxu0 0.0
        %465 = vmatpush.msra.mxu0 0.0
        %466 = vmatpush.msra.mxu0 0.0
        %467 = vmatpush.msra.mxu0 0.0
        %468 = vmatpush.msra.mxu0 0.0
        %469 = vmatpush.msra.mxu0 0.0
        %470 = vmatpush.msra.mxu0 0.0
        %471 = vmatpush.msra.mxu0 0.0
        %472 = vmatpush.msra.mxu0 0.0
        %473 = vmatpush.msra.mxu0 0.0
        %474 = vmatpush.msra.mxu0 0.0
        %475 = vmatpush.msra.mxu0 0.0
        %476 = vmatpush.msra.mxu0 0.0
        %477 = vmatpush.msra.mxu0 0.0
        %478 = vmatpush.msra.mxu0 0.0
        %479 = vmatpush.msra.mxu0 %v460
        %480 = vmatmul.f32.gmra.mxu0 %v458
        %v481 = vpop.f32.mrf.mxu0
        %v482 = vadd.f32 %v452, %v481
        %483 = vdwg.mxu0
        %484 = vmatpush.msra.mxu0 0.0
        %485 = vmatpush.msra.mxu0 0.0
        %486 = vmatpush.msra.mxu0 0.0
        %487 = vmatpush.msra.mxu0 0.0
        %488 = vmatpush.msra.mxu0 0.0
        %489 = vmatpush.msra.mxu0 0.0
        %490 = vmatpush.msra.mxu0 0.0
        %491 = vmatpush.msra.mxu0 0.0
        %492 = vmatpush.msra.mxu0 0.0
        %493 = vmatpush.msra.mxu0 0.0
        %494 = vmatpush.msra.mxu0 0.0
        %495 = vmatpush.msra.mxu0 0.0
        %496 = vmatpush.msra.mxu0 0.0
        %497 = vmatpush.msra.mxu0 0.0
        %498 = vmatpush.msra.mxu0 0.0
        %499 = vmatpush.msra.mxu0 %v462
        %500 = vmatmul.f32.gmra.mxu0 %v458
        %v501 = vpop.f32.mrf.mxu0
        %v502 = vadd.f32 %v452, %v501
        %503 = vdwg.mxu0
        %v504 = vpack.c.bf16 %v388, %v388
        %v505 = vpack.c.bf16 %v389, %v389
        %v506 = vpack.c.bf16 %v425, %v425
        %v507 = vpack.c.bf16 %v445, %v445
        %508 = vxpose.binary.xlu0.c.b16.start [1/16] %v505, %v504, 128
        %509 = vxpose.binary.xlu0.c.b16.cont [2/16] 0, 0, 128
        %510 = vxpose.binary.xlu0.c.b16.cont [3/16] 0, 0, 128
        %511 = vxpose.binary.xlu0.c.b16.cont [4/16] 0, 0, 128
        %512 = vxpose.binary.xlu0.c.b16.cont [5/16] 0, 0, 128
        %513 = vxpose.binary.xlu0.c.b16.cont [6/16] 0, 0, 128
        %514 = vxpose.binary.xlu0.c.b16.cont [7/16] 0, 0, 128
        %515 = vxpose.binary.xlu0.c.b16.end [8/16] 0, 0, 128
        %v516 = vpop.trf.xlu0
        %v517 = vpop.trf.xlu0
        %v518 = vpop.trf.xlu0
        %v519 = vpop.trf.xlu0
        %v520 = vpop.trf.xlu0
        %v521 = vpop.trf.xlu0
        %v522 = vpop.trf.xlu0
        %v523 = vpop.trf.xlu0
        %v524 = vpop.trf.xlu0
        %v525 = vpop.trf.xlu0
        %v526 = vpop.trf.xlu0
        %v527 = vpop.trf.xlu0
        %v528 = vpop.trf.xlu0
        %v529 = vpop.trf.xlu0
        %v530 = vpop.trf.xlu0
        %v531 = vpop.trf.xlu0
        %vm532 = vcmask 15360
        %v534 = vsel %vm532, %v516, 0
        %v537 = vsel %vm532, %v518, 0
        %v540 = vsel %vm532, %v520, 0
        %v543 = vsel %vm532, %v522, 0
        %v546 = vsel %vm532, %v524, 0
        %v549 = vsel %vm532, %v526, 0
        %v552 = vsel %vm532, %v528, 0
        %v555 = vsel %vm532, %v530, 0
        %v558 = vsel %vm532, %v517, 0
        %v561 = vsel %vm532, %v519, 0
        %v564 = vsel %vm532, %v521, 0
        %v567 = vsel %vm532, %v523, 0
        %v570 = vsel %vm532, %v525, 0
        %v573 = vsel %vm532, %v527, 0
        %v576 = vsel %vm532, %v529, 0
        %v579 = vsel %vm532, %v531, 0
        %vm581 = vcmask 1040384
        %v583 = vsel %vm581, %v506, 0
        %v586 = vsel %vm581, %v507, 0
        %588 = vmatpush.bf16.msra.mxu0 0
        %589 = vmatpush.bf16.msra.mxu0 0
        %590 = vmatpush.bf16.msra.mxu0 0
        %591 = vmatpush.bf16.msra.mxu0 0
        %592 = vmatpush.bf16.msra.mxu0 0
        %593 = vmatpush.bf16.msra.mxu0 0
        %594 = vmatpush.bf16.msra.mxu0 0
        %595 = vmatpush.bf16.msra.mxu0 %v583
        %596 = vmatmul.bf16.gmra.mxu0 %v534
        %v597 = vpop.f32.mrf.mxu0
        %v598 = vadd.f32 0.0, %v597
        %v599 = vpop.f32.mrf.mxu0
        %v600 = vadd.f32 0.0, %v599
        %601 = vmatmul.bf16.gmra.mxu0 %v537
        %v602 = vpop.f32.mrf.mxu0
        %v603 = vadd.f32 0.0, %v602
        %v604 = vpop.f32.mrf.mxu0
        %v605 = vadd.f32 0.0, %v604
        %606 = vmatmul.bf16.gmra.mxu0 %v540
        %v607 = vpop.f32.mrf.mxu0
        %v608 = vadd.f32 0.0, %v607
        %v609 = vpop.f32.mrf.mxu0
        %v610 = vadd.f32 0.0, %v609
        %611 = vmatmul.bf16.gmra.mxu0 %v543
        %v612 = vpop.f32.mrf.mxu0
        %v613 = vadd.f32 0.0, %v612
        %v614 = vpop.f32.mrf.mxu0
        %v615 = vadd.f32 0.0, %v614
        %616 = vmatmul.bf16.gmra.mxu0 %v546
        %v617 = vpop.f32.mrf.mxu0
        %v618 = vadd.f32 0.0, %v617
        %v619 = vpop.f32.mrf.mxu0
        %v620 = vadd.f32 0.0, %v619
        %621 = vmatmul.bf16.gmra.mxu0 %v549
        %v622 = vpop.f32.mrf.mxu0
        %v623 = vadd.f32 0.0, %v622
        %v624 = vpop.f32.mrf.mxu0
        %v625 = vadd.f32 0.0, %v624
        %626 = vmatmul.bf16.gmra.mxu0 %v552
        %v627 = vpop.f32.mrf.mxu0
        %v628 = vadd.f32 0.0, %v627
        %v629 = vpop.f32.mrf.mxu0
        %v630 = vadd.f32 0.0, %v629
        %631 = vmatmul.bf16.gmra.mxu0 %v555
        %v632 = vpop.f32.mrf.mxu0
        %v633 = vadd.f32 0.0, %v632
        %v634 = vpop.f32.mrf.mxu0
        %v635 = vadd.f32 0.0, %v634
        %636 = vmatmul.bf16.gmra.mxu0 %v558
        %v637 = vpop.f32.mrf.mxu0
        %v638 = vadd.f32 0.0, %v637
        %v639 = vpop.f32.mrf.mxu0
        %v640 = vadd.f32 0.0, %v639
        %641 = vmatmul.bf16.gmra.mxu0 %v561
        %v642 = vpop.f32.mrf.mxu0
        %v643 = vadd.f32 0.0, %v642
        %v644 = vpop.f32.mrf.mxu0
        %v645 = vadd.f32 0.0, %v644
        %646 = vmatmul.bf16.gmra.mxu0 %v564
        %v647 = vpop.f32.mrf.mxu0
        %v648 = vadd.f32 0.0, %v647
        %v649 = vpop.f32.mrf.mxu0
        %v650 = vadd.f32 0.0, %v649
        %651 = vmatmul.bf16.gmra.mxu0 %v567
        %v652 = vpop.f32.mrf.mxu0
        %v653 = vadd.f32 0.0, %v652
        %v654 = vpop.f32.mrf.mxu0
        %v655 = vadd.f32 0.0, %v654
        %656 = vmatmul.bf16.gmra.mxu0 %v570
        %v657 = vpop.f32.mrf.mxu0
        %v658 = vadd.f32 0.0, %v657
        %v659 = vpop.f32.mrf.mxu0
        %v660 = vadd.f32 0.0, %v659
        %661 = vmatmul.bf16.gmra.mxu0 %v573
        %v662 = vpop.f32.mrf.mxu0
        %v663 = vadd.f32 0.0, %v662
        %v664 = vpop.f32.mrf.mxu0
        %v665 = vadd.f32 0.0, %v664
        %666 = vmatmul.bf16.gmra.mxu0 %v576
        %v667 = vpop.f32.mrf.mxu0
        %v668 = vadd.f32 0.0, %v667
        %v669 = vpop.f32.mrf.mxu0
        %v670 = vadd.f32 0.0, %v669
        %671 = vmatmul.bf16.gmra.mxu0 %v579
        %v672 = vpop.f32.mrf.mxu0
        %v673 = vadd.f32 0.0, %v672
        %v674 = vpop.f32.mrf.mxu0
        %v675 = vadd.f32 0.0, %v674
        %676 = vdwg.mxu0
        %677 = vmatpush.bf16.msra.mxu0 0
        %678 = vmatpush.bf16.msra.mxu0 0
        %679 = vmatpush.bf16.msra.mxu0 0
        %680 = vmatpush.bf16.msra.mxu0 0
        %681 = vmatpush.bf16.msra.mxu0 0
        %682 = vmatpush.bf16.msra.mxu0 0
        %683 = vmatpush.bf16.msra.mxu0 0
        %684 = vmatpush.bf16.msra.mxu0 %v586
        %685 = vmatmul.bf16.gmra.mxu0 %v534
        %v686 = vpop.f32.mrf.mxu0
        %v687 = vadd.f32 0.0, %v686
        %v688 = vpop.f32.mrf.mxu0
        %v689 = vadd.f32 0.0, %v688
        %690 = vmatmul.bf16.gmra.mxu0 %v537
        %v691 = vpop.f32.mrf.mxu0
        %v692 = vadd.f32 0.0, %v691
        %v693 = vpop.f32.mrf.mxu0
        %v694 = vadd.f32 0.0, %v693
        %695 = vmatmul.bf16.gmra.mxu0 %v540
        %v696 = vpop.f32.mrf.mxu0
        %v697 = vadd.f32 0.0, %v696
        %v698 = vpop.f32.mrf.mxu0
        %v699 = vadd.f32 0.0, %v698
        %700 = vmatmul.bf16.gmra.mxu0 %v543
        %v701 = vpop.f32.mrf.mxu0
        %v702 = vadd.f32 0.0, %v701
        %v703 = vpop.f32.mrf.mxu0
        %v704 = vadd.f32 0.0, %v703
        %705 = vmatmul.bf16.gmra.mxu0 %v546
        %v706 = vpop.f32.mrf.mxu0
        %v707 = vadd.f32 0.0, %v706
        %v708 = vpop.f32.mrf.mxu0
        %v709 = vadd.f32 0.0, %v708
        %710 = vmatmul.bf16.gmra.mxu0 %v549
        %v711 = vpop.f32.mrf.mxu0
        %v712 = vadd.f32 0.0, %v711
        %v713 = vpop.f32.mrf.mxu0
        %v714 = vadd.f32 0.0, %v713
        %715 = vmatmul.bf16.gmra.mxu0 %v552
        %v716 = vpop.f32.mrf.mxu0
        %v717 = vadd.f32 0.0, %v716
        %v718 = vpop.f32.mrf.mxu0
        %v719 = vadd.f32 0.0, %v718
        %720 = vmatmul.bf16.gmra.mxu0 %v555
        %v721 = vpop.f32.mrf.mxu0
        %v722 = vadd.f32 0.0, %v721
        %v723 = vpop.f32.mrf.mxu0
        %v724 = vadd.f32 0.0, %v723
        %725 = vmatmul.bf16.gmra.mxu0 %v558
        %v726 = vpop.f32.mrf.mxu0
        %v727 = vadd.f32 0.0, %v726
        %v728 = vpop.f32.mrf.mxu0
        %v729 = vadd.f32 0.0, %v728
        %730 = vmatmul.bf16.gmra.mxu0 %v561
        %v731 = vpop.f32.mrf.mxu0
        %v732 = vadd.f32 0.0, %v731
        %v733 = vpop.f32.mrf.mxu0
        %v734 = vadd.f32 0.0, %v733
        %735 = vmatmul.bf16.gmra.mxu0 %v564
        %v736 = vpop.f32.mrf.mxu0
        %v737 = vadd.f32 0.0, %v736
        %v738 = vpop.f32.mrf.mxu0
        %v739 = vadd.f32 0.0, %v738
        %740 = vmatmul.bf16.gmra.mxu0 %v567
        %v741 = vpop.f32.mrf.mxu0
        %v742 = vadd.f32 0.0, %v741
        %v743 = vpop.f32.mrf.mxu0
        %v744 = vadd.f32 0.0, %v743
        %745 = vmatmul.bf16.gmra.mxu0 %v570
        %v746 = vpop.f32.mrf.mxu0
        %v747 = vadd.f32 0.0, %v746
        %v748 = vpop.f32.mrf.mxu0
        %v749 = vadd.f32 0.0, %v748
        %750 = vmatmul.bf16.gmra.mxu0 %v573
        %v751 = vpop.f32.mrf.mxu0
        %v752 = vadd.f32 0.0, %v751
        %v753 = vpop.f32.mrf.mxu0
        %v754 = vadd.f32 0.0, %v753
        %755 = vmatmul.bf16.gmra.mxu0 %v576
        %v756 = vpop.f32.mrf.mxu0
        %v757 = vadd.f32 0.0, %v756
        %v758 = vpop.f32.mrf.mxu0
        %v759 = vadd.f32 0.0, %v758
        %760 = vmatmul.bf16.gmra.mxu0 %v579
        %v761 = vpop.f32.mrf.mxu0
        %v762 = vadd.f32 0.0, %v761
        %v763 = vpop.f32.mrf.mxu0
        %v764 = vadd.f32 0.0, %v763
        %765 = vdwg.mxu0
        %v766 = vmax.f32 %v598, %v687
        %767 = vmax.xlane.f32.xlu0 %v766
        %v768 = vpop.xlane.xlu0 %767
        %v769 = vmax.f32 %v600, %v689
        %770 = vmax.xlane.f32.xlu0 %v769
        %v771 = vpop.xlane.xlu0 %770
        %v772 = vmax.f32 %v603, %v692
        %773 = vmax.xlane.f32.xlu0 %v772
        %v774 = vpop.xlane.xlu0 %773
        %v775 = vmax.f32 %v605, %v694
        %776 = vmax.xlane.f32.xlu0 %v775
        %v777 = vpop.xlane.xlu0 %776
        %v778 = vmax.f32 %v608, %v697
        %779 = vmax.xlane.f32.xlu0 %v778
        %v780 = vpop.xlane.xlu0 %779
        %v781 = vmax.f32 %v610, %v699
        %782 = vmax.xlane.f32.xlu0 %v781
        %v783 = vpop.xlane.xlu0 %782
        %v784 = vmax.f32 %v613, %v702
        %785 = vmax.xlane.f32.xlu0 %v784
        %v786 = vpop.xlane.xlu0 %785
        %v787 = vmax.f32 %v615, %v704
        %788 = vmax.xlane.f32.xlu0 %v787
        %v789 = vpop.xlane.xlu0 %788
        %v790 = vmax.f32 %v618, %v707
        %791 = vmax.xlane.f32.xlu0 %v790
        %v792 = vpop.xlane.xlu0 %791
        %v793 = vmax.f32 %v620, %v709
        %794 = vmax.xlane.f32.xlu0 %v793
        %v795 = vpop.xlane.xlu0 %794
        %v796 = vmax.f32 %v623, %v712
        %797 = vmax.xlane.f32.xlu0 %v796
        %v798 = vpop.xlane.xlu0 %797
        %v799 = vmax.f32 %v625, %v714
        %800 = vmax.xlane.f32.xlu0 %v799
        %v801 = vpop.xlane.xlu0 %800
        %v802 = vmax.f32 %v628, %v717
        %803 = vmax.xlane.f32.xlu0 %v802
        %v804 = vpop.xlane.xlu0 %803
        %v805 = vmax.f32 %v630, %v719
        %806 = vmax.xlane.f32.xlu0 %v805
        %v807 = vpop.xlane.xlu0 %806
        %v808 = vmax.f32 %v633, %v722
        %809 = vmax.xlane.f32.xlu0 %v808
        %v810 = vpop.xlane.xlu0 %809
        %v811 = vmax.f32 %v635, %v724
        %812 = vmax.xlane.f32.xlu0 %v811
        %v813 = vpop.xlane.xlu0 %812
        %v814 = vmax.f32 %v638, %v727
        %815 = vmax.xlane.f32.xlu0 %v814
        %v816 = vpop.xlane.xlu0 %815
        %v817 = vmax.f32 %v640, %v729
        %818 = vmax.xlane.f32.xlu0 %v817
        %v819 = vpop.xlane.xlu0 %818
        %v820 = vmax.f32 %v643, %v732
        %821 = vmax.xlane.f32.xlu0 %v820
        %v822 = vpop.xlane.xlu0 %821
        %v823 = vmax.f32 %v645, %v734
        %824 = vmax.xlane.f32.xlu0 %v823
        %v825 = vpop.xlane.xlu0 %824
        %v826 = vmax.f32 %v648, %v737
        %827 = vmax.xlane.f32.xlu0 %v826
        %v828 = vpop.xlane.xlu0 %827
        %v829 = vmax.f32 %v650, %v739
        %830 = vmax.xlane.f32.xlu0 %v829
        %v831 = vpop.xlane.xlu0 %830
        %v832 = vmax.f32 %v653, %v742
        %833 = vmax.xlane.f32.xlu0 %v832
        %v834 = vpop.xlane.xlu0 %833
        %v835 = vmax.f32 %v655, %v744
        %836 = vmax.xlane.f32.xlu0 %v835
        %v837 = vpop.xlane.xlu0 %836
        %v838 = vmax.f32 %v658, %v747
        %839 = vmax.xlane.f32.xlu0 %v838
        %v840 = vpop.xlane.xlu0 %839
        %v841 = vmax.f32 %v660, %v749
        %842 = vmax.xlane.f32.xlu0 %v841
        %v843 = vpop.xlane.xlu0 %842
        %v844 = vmax.f32 %v663, %v752
        %845 = vmax.xlane.f32.xlu0 %v844
        %v846 = vpop.xlane.xlu0 %845
        %v847 = vmax.f32 %v665, %v754
        %848 = vmax.xlane.f32.xlu0 %v847
        %v849 = vpop.xlane.xlu0 %848
        %v850 = vmax.f32 %v668, %v757
        %851 = vmax.xlane.f32.xlu0 %v850
        %v852 = vpop.xlane.xlu0 %851
        %v853 = vmax.f32 %v670, %v759
        %854 = vmax.xlane.f32.xlu0 %v853
        %v855 = vpop.xlane.xlu0 %854
        %v856 = vmax.f32 %v673, %v762
        %857 = vmax.xlane.f32.xlu0 %v856
        %v858 = vpop.xlane.xlu0 %857
        %v859 = vmax.f32 %v675, %v764
        %860 = vmax.xlane.f32.xlu0 %v859
        %v861 = vpop.xlane.xlu0 %860
        %v862 = vsub.f32 %v598, %v768
        %v863 = vsub.f32 %v687, %v768
        %v864 = vsub.f32 %v600, %v771
        %v865 = vsub.f32 %v689, %v771
        %v866 = vsub.f32 %v603, %v774
        %v867 = vsub.f32 %v692, %v774
        %v868 = vsub.f32 %v605, %v777
        %v869 = vsub.f32 %v694, %v777
        %v870 = vsub.f32 %v608, %v780
        %v871 = vsub.f32 %v697, %v780
        %v872 = vsub.f32 %v610, %v783
        %v873 = vsub.f32 %v699, %v783
        %v874 = vsub.f32 %v613, %v786
        %v875 = vsub.f32 %v702, %v786
        %v876 = vsub.f32 %v615, %v789
        %v877 = vsub.f32 %v704, %v789
        %v878 = vsub.f32 %v618, %v792
        %v879 = vsub.f32 %v707, %v792
        %v880 = vsub.f32 %v620, %v795
        %v881 = vsub.f32 %v709, %v795
        %v882 = vsub.f32 %v623, %v798
        %v883 = vsub.f32 %v712, %v798
        %v884 = vsub.f32 %v625, %v801
        %v885 = vsub.f32 %v714, %v801
        %v886 = vsub.f32 %v628, %v804
        %v887 = vsub.f32 %v717, %v804
        %v888 = vsub.f32 %v630, %v807
        %v889 = vsub.f32 %v719, %v807
        %v890 = vsub.f32 %v633, %v810
        %v891 = vsub.f32 %v722, %v810
        %v892 = vsub.f32 %v635, %v813
        %v893 = vsub.f32 %v724, %v813
        %v894 = vsub.f32 %v638, %v816
        %v895 = vsub.f32 %v727, %v816
        %v896 = vsub.f32 %v640, %v819
        %v897 = vsub.f32 %v729, %v819
        %v898 = vsub.f32 %v643, %v822
        %v899 = vsub.f32 %v732, %v822
        %v900 = vsub.f32 %v645, %v825
        %v901 = vsub.f32 %v734, %v825
        %v902 = vsub.f32 %v648, %v828
        %v903 = vsub.f32 %v737, %v828
        %v904 = vsub.f32 %v650, %v831
        %v905 = vsub.f32 %v739, %v831
        %v906 = vsub.f32 %v653, %v834
        %v907 = vsub.f32 %v742, %v834
        %v908 = vsub.f32 %v655, %v837
        %v909 = vsub.f32 %v744, %v837
        %v910 = vsub.f32 %v658, %v840
        %v911 = vsub.f32 %v747, %v840
        %v912 = vsub.f32 %v660, %v843
        %v913 = vsub.f32 %v749, %v843
        %v914 = vsub.f32 %v663, %v846
        %v915 = vsub.f32 %v752, %v846
        %v916 = vsub.f32 %v665, %v849
        %v917 = vsub.f32 %v754, %v849
        %v918 = vsub.f32 %v668, %v852
        %v919 = vsub.f32 %v757, %v852
        %v920 = vsub.f32 %v670, %v855
        %v921 = vsub.f32 %v759, %v855
        %v922 = vsub.f32 %v673, %v858
        %v923 = vsub.f32 %v762, %v858
        %v924 = vsub.f32 %v675, %v861
        %v925 = vsub.f32 %v764, %v861
        %v926 = vmul.f32 %v862, 1.442695
        %v927 = vpow.pop %v926
        %v928 = vmul.f32 %v863, 1.442695
        %v929 = vpow.pop %v928
        %v930 = vmul.f32 %v864, 1.442695
        %v931 = vpow.pop %v930
        %v932 = vmul.f32 %v865, 1.442695
        %v933 = vpow.pop %v932
        %v934 = vmul.f32 %v866, 1.442695
        %v935 = vpow.pop %v934
        %v936 = vmul.f32 %v867, 1.442695
        %v937 = vpow.pop %v936
        %v938 = vmul.f32 %v868, 1.442695
        %v939 = vpow.pop %v938
        %v940 = vmul.f32 %v869, 1.442695
        %v941 = vpow.pop %v940
        %v942 = vmul.f32 %v870, 1.442695
        %v943 = vpow.pop %v942
        %v944 = vmul.f32 %v871, 1.442695
        %v945 = vpow.pop %v944
        %v946 = vmul.f32 %v872, 1.442695
        %v947 = vpow.pop %v946
        %v948 = vmul.f32 %v873, 1.442695
        %v949 = vpow.pop %v948
        %v950 = vmul.f32 %v874, 1.442695
        %v951 = vpow.pop %v950
        %v952 = vmul.f32 %v875, 1.442695
        %v953 = vpow.pop %v952
        %v954 = vmul.f32 %v876, 1.442695
        %v955 = vpow.pop %v954
        %v956 = vmul.f32 %v877, 1.442695
        %v957 = vpow.pop %v956
        %v958 = vmul.f32 %v878, 1.442695
        %v959 = vpow.pop %v958
        %v960 = vmul.f32 %v879, 1.442695
        %v961 = vpow.pop %v960
        %v962 = vmul.f32 %v880, 1.442695
        %v963 = vpow.pop %v962
        %v964 = vmul.f32 %v881, 1.442695
        %v965 = vpow.pop %v964
        %v966 = vmul.f32 %v882, 1.442695
        %v967 = vpow.pop %v966
        %v968 = vmul.f32 %v883, 1.442695
        %v969 = vpow.pop %v968
        %v970 = vmul.f32 %v884, 1.442695
        %v971 = vpow.pop %v970
        %v972 = vmul.f32 %v885, 1.442695
        %v973 = vpow.pop %v972
        %v974 = vmul.f32 %v886, 1.442695
        %v975 = vpow.pop %v974
        %v976 = vmul.f32 %v887, 1.442695
        %v977 = vpow.pop %v976
        %v978 = vmul.f32 %v888, 1.442695
        %v979 = vpow.pop %v978
        %v980 = vmul.f32 %v889, 1.442695
        %v981 = vpow.pop %v980
        %v982 = vmul.f32 %v890, 1.442695
        %v983 = vpow.pop %v982
        %v984 = vmul.f32 %v891, 1.442695
        %v985 = vpow.pop %v984
        %v986 = vmul.f32 %v892, 1.442695
        %v987 = vpow.pop %v986
        %v988 = vmul.f32 %v893, 1.442695
        %v989 = vpow.pop %v988
        %v990 = vmul.f32 %v894, 1.442695
        %v991 = vpow.pop %v990
        %v992 = vmul.f32 %v895, 1.442695
        %v993 = vpow.pop %v992
        %v994 = vmul.f32 %v896, 1.442695
        %v995 = vpow.pop %v994
        %v996 = vmul.f32 %v897, 1.442695
        %v997 = vpow.pop %v996
        %v998 = vmul.f32 %v898, 1.442695
        %v999 = vpow.pop %v998
        %v1000 = vmul.f32 %v899, 1.442695
        %v1001 = vpow.pop %v1000
        %v1002 = vmul.f32 %v900, 1.442695
        %v1003 = vpow.pop %v1002
        %v1004 = vmul.f32 %v901, 1.442695
        %v1005 = vpow.pop %v1004
        %v1006 = vmul.f32 %v902, 1.442695
        %v1007 = vpow.pop %v1006
        %v1008 = vmul.f32 %v903, 1.442695
        %v1009 = vpow.pop %v1008
        %v1010 = vmul.f32 %v904, 1.442695
        %v1011 = vpow.pop %v1010
        %v1012 = vmul.f32 %v905, 1.442695
        %v1013 = vpow.pop %v1012
        %v1014 = vmul.f32 %v906, 1.442695
        %v1015 = vpow.pop %v1014
        %v1016 = vmul.f32 %v907, 1.442695
        %v1017 = vpow.pop %v1016
        %v1018 = vmul.f32 %v908, 1.442695
        %v1019 = vpow.pop %v1018
        %v1020 = vmul.f32 %v909, 1.442695
        %v1021 = vpow.pop %v1020
        %v1022 = vmul.f32 %v910, 1.442695
        %v1023 = vpow.pop %v1022
        %v1024 = vmul.f32 %v911, 1.442695
        %v1025 = vpow.pop %v1024
        %v1026 = vmul.f32 %v912, 1.442695
        %v1027 = vpow.pop %v1026
        %v1028 = vmul.f32 %v913, 1.442695
        %v1029 = vpow.pop %v1028
        %v1030 = vmul.f32 %v914, 1.442695
        %v1031 = vpow.pop %v1030
        %v1032 = vmul.f32 %v915, 1.442695
        %v1033 = vpow.pop %v1032
        %v1034 = vmul.f32 %v916, 1.442695
        %v1035 = vpow.pop %v1034
        %v1036 = vmul.f32 %v917, 1.442695
        %v1037 = vpow.pop %v1036
        %v1038 = vmul.f32 %v918, 1.442695
        %v1039 = vpow.pop %v1038
        %v1040 = vmul.f32 %v919, 1.442695
        %v1041 = vpow.pop %v1040
        %v1042 = vmul.f32 %v920, 1.442695
        %v1043 = vpow.pop %v1042
        %v1044 = vmul.f32 %v921, 1.442695
        %v1045 = vpow.pop %v1044
        %v1046 = vmul.f32 %v922, 1.442695
        %v1047 = vpow.pop %v1046
        %v1048 = vmul.f32 %v923, 1.442695
        %v1049 = vpow.pop %v1048
        %v1050 = vmul.f32 %v924, 1.442695
        %v1051 = vpow.pop %v1050
        %v1052 = vmul.f32 %v925, 1.442695
        %v1053 = vpow.pop %v1052
        %v1054 = vpack.c.bf16 %v931, %v927
        %v1055 = vpack.c.bf16 %v933, %v929
        %v1056 = vpack.c.bf16 %v939, %v935
        %v1057 = vpack.c.bf16 %v941, %v937
        %v1058 = vpack.c.bf16 %v947, %v943
        %v1059 = vpack.c.bf16 %v949, %v945
        %v1060 = vpack.c.bf16 %v955, %v951
        %v1061 = vpack.c.bf16 %v957, %v953
        %v1062 = vpack.c.bf16 %v963, %v959
        %v1063 = vpack.c.bf16 %v965, %v961
        %v1064 = vpack.c.bf16 %v971, %v967
        %v1065 = vpack.c.bf16 %v973, %v969
        %v1066 = vpack.c.bf16 %v979, %v975
        %v1067 = vpack.c.bf16 %v981, %v977
        %v1068 = vpack.c.bf16 %v987, %v983
        %v1069 = vpack.c.bf16 %v989, %v985
        %v1070 = vpack.c.bf16 %v995, %v991
        %v1071 = vpack.c.bf16 %v997, %v993
        %v1072 = vpack.c.bf16 %v1003, %v999
        %v1073 = vpack.c.bf16 %v1005, %v1001
        %v1074 = vpack.c.bf16 %v1011, %v1007
        %v1075 = vpack.c.bf16 %v1013, %v1009
        %v1076 = vpack.c.bf16 %v1019, %v1015
        %v1077 = vpack.c.bf16 %v1021, %v1017
        %v1078 = vpack.c.bf16 %v1027, %v1023
        %v1079 = vpack.c.bf16 %v1029, %v1025
        %v1080 = vpack.c.bf16 %v1035, %v1031
        %v1081 = vpack.c.bf16 %v1037, %v1033
        %v1082 = vpack.c.bf16 %v1043, %v1039
        %v1083 = vpack.c.bf16 %v1045, %v1041
        %v1084 = vpack.c.bf16 %v1051, %v1047
        %v1085 = vpack.c.bf16 %v1053, %v1049
        %v1086 = vpack.c.bf16 %v482, %v482
        %v1087 = vpack.c.bf16 %v502, %v502
        %1088 = vmatpush.bf16.xpose.msra.mxu0 %v1068
        %1089 = vmatpush.bf16.xpose.msra.mxu0 %v1066
        %1090 = vmatpush.bf16.xpose.msra.mxu0 %v1064
        %1091 = vmatpush.bf16.xpose.msra.mxu0 %v1062
        %1092 = vmatpush.bf16.xpose.msra.mxu0 %v1060
        %1093 = vmatpush.bf16.xpose.msra.mxu0 %v1058
        %1094 = vmatpush.bf16.xpose.msra.mxu0 %v1056
        %1095 = vmatpush.bf16.xpose.msra.mxu0 %v1054
        %1096 = vmatmul.bf16.gmra.mxu0 %v1086
        %v1097 = vpop.f32.mrf.mxu0
        %v1098 = vadd.f32 0.0, %v1097
        %v1099 = vpop.f32.mrf.mxu0
        %1100 = vdwg.mxu0
        %1101 = vmatpush.bf16.xpose.msra.mxu0 %v1069
        %1102 = vmatpush.bf16.xpose.msra.mxu0 %v1067
        %1103 = vmatpush.bf16.xpose.msra.mxu0 %v1065
        %1104 = vmatpush.bf16.xpose.msra.mxu0 %v1063
        %1105 = vmatpush.bf16.xpose.msra.mxu0 %v1061
        %1106 = vmatpush.bf16.xpose.msra.mxu0 %v1059
        %1107 = vmatpush.bf16.xpose.msra.mxu0 %v1057
        %1108 = vmatpush.bf16.xpose.msra.mxu0 %v1055
        %1109 = vmatmul.bf16.gmra.mxu0 %v1087
        %v1110 = vpop.f32.mrf.mxu0
        %v1111 = vadd.f32 %v1098, %v1110
        %v1112 = vpop.f32.mrf.mxu0
        %1113 = vdwg.mxu0
        %1114 = vmatpush.bf16.xpose.msra.mxu0 %v1084
        %1115 = vmatpush.bf16.xpose.msra.mxu0 %v1082
        %1116 = vmatpush.bf16.xpose.msra.mxu0 %v1080
        %1117 = vmatpush.bf16.xpose.msra.mxu0 %v1078
        %1118 = vmatpush.bf16.xpose.msra.mxu0 %v1076
        %1119 = vmatpush.bf16.xpose.msra.mxu0 %v1074
        %1120 = vmatpush.bf16.xpose.msra.mxu0 %v1072
        %1121 = vmatpush.bf16.xpose.msra.mxu0 %v1070
        %1122 = vmatmul.bf16.gmra.mxu0 %v1086
        %v1123 = vpop.f32.mrf.mxu0
        %v1124 = vadd.f32 0.0, %v1123
        %v1125 = vpop.f32.mrf.mxu0
        %1126 = vdwg.mxu0
        %1127 = vmatpush.bf16.xpose.msra.mxu0 %v1085
        %1128 = vmatpush.bf16.xpose.msra.mxu0 %v1083
        %1129 = vmatpush.bf16.xpose.msra.mxu0 %v1081
        %1130 = vmatpush.bf16.xpose.msra.mxu0 %v1079
        %1131 = vmatpush.bf16.xpose.msra.mxu0 %v1077
        %1132 = vmatpush.bf16.xpose.msra.mxu0 %v1075
        %1133 = vmatpush.bf16.xpose.msra.mxu0 %v1073
        %1134 = vmatpush.bf16.xpose.msra.mxu0 %v1071
        %1135 = vmatmul.bf16.gmra.mxu0 %v1087
        %v1136 = vpop.f32.mrf.mxu0
        %v1137 = vadd.f32 %v1124, %v1136
        %v1138 = vpop.f32.mrf.mxu0
        %1139 = vdwg.mxu0
        %1140 = vmatpush.bf16.xpose.msra.mxu0 %v1068
        %1141 = vmatpush.bf16.xpose.msra.mxu0 %v1066
        %1142 = vmatpush.bf16.xpose.msra.mxu0 %v1064
        %1143 = vmatpush.bf16.xpose.msra.mxu0 %v1062
        %1144 = vmatpush.bf16.xpose.msra.mxu0 %v1060
        %1145 = vmatpush.bf16.xpose.msra.mxu0 %v1058
        %1146 = vmatpush.bf16.xpose.msra.mxu0 %v1056
        %1147 = vmatpush.bf16.xpose.msra.mxu0 %v1054
        %1148 = vmatmul.bf16.gmra.mxu0 1065369472
        %v1149 = vpop.f32.mrf.mxu0
        %v1150 = vadd.f32 0.0, %v1149
        %v1151 = vpop.f32.mrf.mxu0
        %1152 = vdwg.mxu0
        %1153 = vmatpush.bf16.xpose.msra.mxu0 %v1069
        %1154 = vmatpush.bf16.xpose.msra.mxu0 %v1067
        %1155 = vmatpush.bf16.xpose.msra.mxu0 %v1065
        %1156 = vmatpush.bf16.xpose.msra.mxu0 %v1063
        %1157 = vmatpush.bf16.xpose.msra.mxu0 %v1061
        %1158 = vmatpush.bf16.xpose.msra.mxu0 %v1059
        %1159 = vmatpush.bf16.xpose.msra.mxu0 %v1057
        %1160 = vmatpush.bf16.xpose.msra.mxu0 %v1055
        %1161 = vmatmul.bf16.gmra.mxu0 1065369472
        %v1162 = vpop.f32.mrf.mxu0
        %v1163 = vadd.f32 %v1150, %v1162
        %v1164 = vpop.f32.mrf.mxu0
        %1165 = vdwg.mxu0
        %1166 = vmatpush.bf16.xpose.msra.mxu0 %v1084
        %1167 = vmatpush.bf16.xpose.msra.mxu0 %v1082
        %1168 = vmatpush.bf16.xpose.msra.mxu0 %v1080
        %1169 = vmatpush.bf16.xpose.msra.mxu0 %v1078
        %1170 = vmatpush.bf16.xpose.msra.mxu0 %v1076
        %1171 = vmatpush.bf16.xpose.msra.mxu0 %v1074
        %1172 = vmatpush.bf16.xpose.msra.mxu0 %v1072
        %1173 = vmatpush.bf16.xpose.msra.mxu0 %v1070
        %1174 = vmatmul.bf16.gmra.mxu0 1065369472
        %v1175 = vpop.f32.mrf.mxu0
        %v1176 = vadd.f32 0.0, %v1175
        %v1177 = vpop.f32.mrf.mxu0
        %1178 = vdwg.mxu0
        %1179 = vmatpush.bf16.xpose.msra.mxu0 %v1085
        %1180 = vmatpush.bf16.xpose.msra.mxu0 %v1083
        %1181 = vmatpush.bf16.xpose.msra.mxu0 %v1081
        %1182 = vmatpush.bf16.xpose.msra.mxu0 %v1079
        %1183 = vmatpush.bf16.xpose.msra.mxu0 %v1077
        %1184 = vmatpush.bf16.xpose.msra.mxu0 %v1075
        %1185 = vmatpush.bf16.xpose.msra.mxu0 %v1073
        %1186 = vmatpush.bf16.xpose.msra.mxu0 %v1071
        %1187 = vmatmul.bf16.gmra.mxu0 1065369472
        %v1188 = vpop.f32.mrf.mxu0
        %v1189 = vadd.f32 %v1176, %v1188
        %v1190 = vpop.f32.mrf.mxu0
        %1191 = vdwg.mxu0
        %v1192 = vrcp.pop %v1163
        %v1193 = vrcp.pop %v1189
        %v1194 = vperm.slane %v1192, 0
        %v1195 = vperm.slane %v1193, 0
        %v1196 = vmul.f32 %v1111, %v1194
        %v1197 = vmul.f32 %v1137, %v1195
        %s1198 = sld [smem:[#allocation2]]
        %v1199 = vstv %s1198
        %v1200 = vmul.f32 %v1199, %v1196
        %v1201 = vmul.f32 %v1199, %v1197
        %1202 = vst [vmem:[#allocation1] ss:$2 sm:$0xff] %v327
        %v1203 = vld.sshfl [vmem:[#allocation1] sm:$0xff pattern:$0x75316420]
        %v1204 = vld.sshfl [vmem:[#allocation1 + $0x8] sm:$0xff pattern:$0x75316420]
        %v1207 = vadd.f32 %v1200, %v1203
        %v1208 = vadd.f32 %v1201, %v1204
        %v1211 = vrot.slane %v1208, 4
        %v1212 = vsel %vm343, %v1207, %v1211
        %1214 = vst [vmem:[%s324] sm:$0xff] %v1212
        %s1215 = sand.u32 %s207, 1
        %s1216 = scalar_lea.sflag [#allocation5], %s1215
        %s1217 = sand.u32 %s207, 1
        %s1218 = smul.addr %s1217, 8
        %s1219 = scalar_lea.vmem [#allocation6], %s1218
        // Predicated region
        $region57: #{tpu_custom_call.1} parent=51 // pred_check
          %p1220 = pneg %p217
        $region58: #{tpu_custom_call.1} parent=51 // pred_check_branch
          %1222 = sbr.rel (%p1220) target = $region60
        $region59: #{tpu_custom_call.1} parent=51 // pred_region
          %1224 = vsyncadd %s1216, 0
          %s1225 = smul.addr %s26, 2
          %s1226 = smul.addr %s1225, 4
          %s1227 = scalar_lea.hbm %s8, %s1226
          %s1229 = sshll.u32 %s1219, 4
          %s1230 = int_to_ptr.vmem [resolvable:$true] %s1229
          %s1231 = sshll.u32 %s1227, 4
          %s1232 = int_to_ptr.hbm [resolvable:$true] %s1231
          %1234 = dma.vmem_to_hbm [thread:$0]  %s1230, 128, %s1232, %s1216
        $region60: #{tpu_custom_call.1} parent=51 // pred_fallthru
          _
      $region52: #{tpu_custom_call.1} parent=5 // pred_fallthru
        _
      %p1235 = scmp.le.s32.totalorder 2, %s21
      // Predicated region
      $region61: #{tpu_custom_call.1} parent=5 // pred_check
        %p1236 = pneg %p1235
      $region62: #{tpu_custom_call.1} parent=5 // pred_check_branch
        %1238 = sbr.rel (%p1236) target = $region64
      $region63: #{tpu_custom_call.1} parent=5 // pred_region
        %s1239 = ssub.s32 %s21, 2
        // Predicated region
        $region65: #{tpu_custom_call.1} parent=63 // pred_check
          %p1240 = pneg %p223
        $region66: #{tpu_custom_call.1} parent=63 // pred_check_branch
          %1242 = sbr.rel (%p1240) target = $region68
        $region67: #{tpu_custom_call.1} parent=63 // pred_region
          %s1243 = sand.u32 %s208, 1
          %s1244 = scalar_lea.sflag [#allocation5], %s1243
          %s1245 = sand.u32 %s208, 1
          %s1246 = smul.addr %s1245, 8
          %s1247 = scalar_lea.vmem [#allocation6], %s1246
          %1249 = dma.done %s1244, 128
        $region68: #{tpu_custom_call.1} parent=63 // pred_fallthru
          _
      $region64: #{tpu_custom_call.1} parent=5 // pred_fallthru
        _
    $region6: #{tpu_custom_call.1} parent=1 // loop_footer
      %s25 = sadd.s32 1, %s21
    $region7: #{tpu_custom_call.1} parent=1 // loop_footer_branch
      %20 = sbr.rel target = $region3
    $region8: #{tpu_custom_call.1} parent=1 // loop_exit
      _
    %1250 = vsyncpa [#allocation4], 1
    %s1251 = scalar_lea.sflag [#allocation4], 1
    %1252 = vsyncpa %s1251, 1
    %1253 = vsyncpa [#allocation5], 1
    %s1254 = scalar_lea.sflag [#allocation5], 1
    %1255 = vsyncpa %s1254, 1

</llo_original>
